<compile_context>
chip_gen: v6e
topology: v6e:2x2x1
jax: 0.10.0
libtpu: 0.0.40
codegen_flags: <defaults>
</compile_context>

<pallas_src>
import functools

import jax
import jax.numpy as jnp
from jax import lax
from jax.experimental import pallas as pl
from jax.experimental.pallas import tpu as pltpu

EPS = 1e-5  # nn.InstanceNorm2d default eps


def upconv_kernel(cols_ref, w_ref, o_ref, *, n_phase: int, activation: bool, inv_hw: float):
    # cols_ref: (1, P, CKK, HWq) bf16 ; w_ref: (P, Cb, CKK) bf16 ; o_ref: (1, P, Cb, HWq) f32
    cb = w_ref.shape[1]

    # Pass 1: one small zero-free MXU matmul per phase (bf16 in, f32 accumulate).
    # Keep the P un-normalized tiles in vregs (no o_ref stash / re-read) and accumulate
    # the per-channel spatial sums on the fly.
    ys = []
    ssum = jnp.zeros((cb, 1), jnp.float32)
    for ph in range(n_phase):                                   # static, unrolled
        y = jnp.dot(w_ref[ph], cols_ref[0, ph],                 # (Cb, CKK) @ (CKK, HWq)
                    preferred_element_type=jnp.float32)
        ys.append(y)
        ssum = ssum + jnp.sum(y, axis=1, keepdims=True)

    # InstanceNorm stats over the full spatial extent (all phases); per-channel, so a Cout
    # grid axis does not change the math.  Centered variance avoids E[y^2]-mean^2 cancellation.
    mean = ssum * inv_hw
    ssq = jnp.zeros((cb, 1), jnp.float32)
    for y in ys:
        d = y - mean
        ssq = ssq + jnp.sum(d * d, axis=1, keepdims=True)
    rstd = lax.rsqrt(ssq * inv_hw + EPS)

    # Pass 2 (fused): normalize (+ ReLU) in registers, store each phase exactly once
    # (HWq is a multiple of 128 -> unmasked lane-dense stores).
    for ph in range(n_phase):
        yn = (ys[ph] - mean) * rstd
        if activation:
            yn = jnp.maximum(yn, 0.0)
        o_ref[0, ph] = yn


@functools.partial(jax.jit, static_argnames=("stride", "padding", "activation"))
def upconv_layer(x, weight, bias=None, *, stride: int, padding: int, activation: bool = True):
    """x: (B, Cin, H, W); weight: (Cin, Cout, K, K) (PyTorch ConvTranspose2d layout).

    `bias` is accepted for API parity but intentionally unused: a per-channel bias added
    before affine=False InstanceNorm is mathematically a no-op (mean subtraction cancels it).
    """
    del bias
    B, Cin, H, W = x.shape
    Cin_w, Cout, K, _ = weight.shape
    assert Cin == Cin_w
    s, p = stride, padding
    Hout = (H - 1) * s - 2 * p + K
    Wout = (W - 1) * s - 2 * p + K
    # Fast-path assumptions (hold for the typical up-conv config K=4, stride=2, padding=1).
    # TODO(synk): K % s != 0 or unequal-sized phases would need the zero-dilation fallback path.
    assert K % s == 0 and Hout % s == 0 and Wout % s == 0, \
        "phase decomposition requires K, Hout, Wout divisible by stride"
    Km = K // s
    Hq, Wq = Hout // s, Wout // s
    P = s * s
    CKK = Cin * Km * Km
    HWq = Hq * Wq

    op_dtype = jnp.bfloat16  # MXU operand dtype; accumulation & norm stay f32 in-kernel.

    # One global zero-pad of the ORIGINAL input that covers every phase window (no dilation),
    # cast to bf16 *before* the im2col so the materialized intermediate is half-size.
    dmax = (s - 1 + p) // s
    pad_lo = Km - 1
    pad_hi_h = max(dmax + Hq - H, 0)
    pad_hi_w = max(dmax + Wq - W, 0)
    xg = jnp.pad(x, ((0, 0), (0, 0), (pad_lo, pad_hi_h), (pad_lo, pad_hi_w))).astype(op_dtype)

    # Per-phase im2col on the undilated input + matching per-phase weight matrices.
    # y_phase[co, qh, qw] = sum_{ci,m,n} x[ci, qh+dh-m, qw+dw-n] * w[ci, co, rh+s*m, rw+s*n]
    cols_phases, wmats = [], []
    for fh in range(s):
        for fw in range(s):
            rh, dh = (fh + p) % s, (fh + p) // s
            rw, dw = (fw + p) % s, (fw + p) // s
            taps = [xg[:, :, dh + m:dh + m + Hq, dw + n:dw + n + Wq]
                    for m in range(Km) for n in range(Km)]          # each (B, Cin, Hq, Wq) bf16
            cols_phases.append(jnp.stack(taps, axis=2).reshape(B, CKK, HWq))
            wsub = weight[:, :, rh::s, rw::s][:, :, ::-1, ::-1]     # (Cin, Cout, Km, Km), flipped
            wmats.append(jnp.transpose(wsub, (1, 0, 2, 3)).reshape(Cout, CKK))
    cols = jnp.stack(cols_phases, axis=1)                           # (B, P, CKK, HWq) bf16
    wmat = jnp.stack(wmats, axis=0).astype(op_dtype)                # (P, Cout, CKK)    bf16

    # Cout tiling (bounds VMEM on v7x's 64 MiB; stats are per-channel so it is exact).
    # NOTE: at this toy size CKK=16 < 128 lanes, so the weight tile is lane-padded; production
    # configs should keep CKK a multiple of 128 to fill the MXU contraction dim.
    block_co = min(Cout, 128)
    assert Cout % block_co == 0
    nc = Cout // block_co
    grid = (B, nc)   # both "parallel"; cols' block index is constant along the inner Cout axis.

    cost = pl.CostEstimate(
        flops=2 * B * P * Cout * CKK * HWq,
        transcendentals=0,
        bytes_accessed=(cols.size * 2 + B * wmat.size * 2 + 4 * B * P * Cout * HWq),
    )

    # Explicit VMEM budget (double-buffered blocks + headroom), capped well below v7x's 64 MiB.
    blk_bytes = (P * CKK * HWq + P * block_co * CKK) * 2 + P * block_co * HWq * 4
    vmem_limit = int(min(max(8 * blk_bytes, 4 << 20), 32 << 20))

    out_ph = pl.pallas_call(
        functools.partial(upconv_kernel, n_phase=P, activation=activation,
                          inv_hw=1.0 / float(Hout * Wout)),
        out_shape=jax.ShapeDtypeStruct((B, P, Cout, HWq), jnp.float32),
        grid=grid,
        in_specs=[
            pl.BlockSpec((1, P, CKK, HWq), lambda b, j: (b, 0, 0, 0)),
            pl.BlockSpec((P, block_co, CKK), lambda b, j: (0, j, 0)),
        ],
        out_specs=pl.BlockSpec((1, P, block_co, HWq), lambda b, j: (b, 0, j, 0)),
        compiler_params=pltpu.CompilerParams(
            dimension_semantics=("parallel", "parallel"),
            vmem_limit_bytes=vmem_limit),
        cost_estimate=cost,
    )(cols, wmat)

    # Pixel-shuffle the phases back to NCHW (output-sized layout op, handled by XLA).
    o = out_ph.reshape(B, s, s, Cout, Hq, Wq)          # [b, fh, fw, co, qh, qw]
    o = jnp.transpose(o, (0, 3, 4, 1, 5, 2))           # [b, co, qh, fh, qw, fw]
    return o.reshape(B, Cout, Hout, Wout)


def reference(x, weight, bias, *, stride: int, padding: int, activation: bool = True):
    """Pure-JAX f32 reference matching PyTorch semantics (bias included; it cancels in the norm)."""
    Cin, Cout, K, _ = weight.shape
    wf = jnp.transpose(weight[:, :, ::-1, ::-1], (1, 0, 2, 3))      # (Cout, Cin, K, K)
    pe = K - 1 - padding
    y = lax.conv_general_dilated(
        x, wf, window_strides=(1, 1), padding=[(pe, pe), (pe, pe)],
        lhs_dilation=(stride, stride), dimension_numbers=("NCHW", "OIHW", "NCHW"),
    )
    y = y + bias[None, :, None, None]
    mean = jnp.mean(y, axis=(2, 3), keepdims=True)
    var = jnp.mean((y - mean) ** 2, axis=(2, 3), keepdims=True)
    yn = (y - mean) * lax.rsqrt(var + EPS)
    return jnp.maximum(yn, 0.0) if activation else yn


if __name__ == "__main__":
    # ConvTranspose2d(4, 8, 4, stride=2, padding=1) — the classic 2x up-conv config.
    B, Cin, Cout, H, W, K = 2, 4, 8, 16, 16, 4
    stride, padding = 2, 1

    key = jax.random.PRNGKey(0)
    kx, kw, kb = jax.random.split(key, 3)
    x = jax.random.normal(kx, (B, Cin, H, W), dtype=jnp.float32)
    # PyTorch ConvTranspose2d weight shape: (in_channels, out_channels, kH, kW)
    weight = 0.1 * jax.random.normal(kw, (Cin, Cout, K, K), dtype=jnp.float32)
    bias = 0.1 * jax.random.normal(kb, (Cout,), dtype=jnp.float32)

    out = upconv_layer(x, weight, bias, stride=stride, padding=padding, activation=True)
    out = jax.block_until_ready(out)

    ref = reference(x, weight, bias, stride=stride, padding=padding, activation=True)
    assert out.shape == (B, Cout, (H - 1) * stride - 2 * padding + K,
                         (W - 1) * stride - 2 * padding + K)
    # bf16 MXU operands (f32 accumulation): expected error ~4e-3 on the unit-variance
    # normalized output; assert with comfortable margin.
    assert jnp.allclose(out, ref, atol=2e-2, rtol=2e-2), "Pallas kernel mismatch vs reference"

    print("KERNEL_OK")
</pallas_src>

<mosaic_0001>
module attributes {stable_mosaic.version = 11 : i64} {
  func.func @upconv_kernel(%arg0: i32, %arg1: i32, %arg2: memref<1x4x16x256xbf16, #tpu.memory_space<vmem>>, %arg3: memref<4x8x16xbf16, #tpu.memory_space<vmem>>, %arg4: memref<1x4x8x256xf32, #tpu.memory_space<vmem>>) attributes {dimension_semantics = [#tpu.dimension_semantics<parallel>, #tpu.dimension_semantics<parallel>], iteration_bounds = array<i64: 2, 1>, scalar_prefetch = 0 : i64, scratch_operands = 0 : i64, tpu.core_type = #tpu.core_type<tc>, window_params = [{transform_indices = @transform_0, window_bounds = array<i64: 1, 4, 16, 256>}, {transform_indices = @transform_1, window_bounds = array<i64: 4, 8, 16>}, {transform_indices = @transform_2, window_bounds = array<i64: 1, 4, 8, 256>}]} {
    %cst = arith.constant 0.000000e+00 : f32
    %0 = vector.broadcast %cst : f32 to vector<8x1xf32>
    %c0 = arith.constant 0 : index
    %c0_0 = arith.constant 0 : index
    %c0_1 = arith.constant 0 : index
    %1 = vector.load %arg3[%c0, %c0_0, %c0_1] : memref<4x8x16xbf16, #tpu.memory_space<vmem>>, vector<1x8x16xbf16>
    %2 = vector.shape_cast %1 : vector<1x8x16xbf16> to vector<8x16xbf16>
    %c0_2 = arith.constant 0 : index
    %c0_3 = arith.constant 0 : index
    %c0_4 = arith.constant 0 : index
    %c0_5 = arith.constant 0 : index
    %3 = vector.load %arg2[%c0_2, %c0_3, %c0_4, %c0_5] : memref<1x4x16x256xbf16, #tpu.memory_space<vmem>>, vector<1x1x16x256xbf16>
    %4 = vector.shape_cast %3 : vector<1x1x16x256xbf16> to vector<16x256xbf16>
    %cst_6 = arith.constant dense<0.000000e+00> : vector<8x256xf32>
    %5 = tpu.matmul %2, %4, %cst_6 {dimension_numbers = #tpu.dot_dimension_numbers<[1], [0], [0], [1], [0, 0, 1, 1], [], []>} : vector<8x16xbf16>, vector<16x256xbf16>, vector<8x256xf32> -> vector<8x256xf32>
    %cst_7 = arith.constant dense<0.000000e+00> : vector<8xf32>
    %6 = vector.multi_reduction <add>, %5, %cst_7 [1] : vector<8x256xf32> to vector<8xf32>
    %7 = vector.shape_cast %6 : vector<8xf32> to vector<8x1xf32>
    %8 = arith.addf %0, %7 : vector<8x1xf32>
    %c1 = arith.constant 1 : index
    %c0_8 = arith.constant 0 : index
    %c0_9 = arith.constant 0 : index
    %9 = vector.load %arg3[%c1, %c0_8, %c0_9] : memref<4x8x16xbf16, #tpu.memory_space<vmem>>, vector<1x8x16xbf16>
    %10 = vector.shape_cast %9 : vector<1x8x16xbf16> to vector<8x16xbf16>
    %c0_10 = arith.constant 0 : index
    %c1_11 = arith.constant 1 : index
    %c0_12 = arith.constant 0 : index
    %c0_13 = arith.constant 0 : index
    %11 = vector.load %arg2[%c0_10, %c1_11, %c0_12, %c0_13] : memref<1x4x16x256xbf16, #tpu.memory_space<vmem>>, vector<1x1x16x256xbf16>
    %12 = vector.shape_cast %11 : vector<1x1x16x256xbf16> to vector<16x256xbf16>
    %cst_14 = arith.constant dense<0.000000e+00> : vector<8x256xf32>
    %13 = tpu.matmul %10, %12, %cst_14 {dimension_numbers = #tpu.dot_dimension_numbers<[1], [0], [0], [1], [0, 0, 1, 1], [], []>} : vector<8x16xbf16>, vector<16x256xbf16>, vector<8x256xf32> -> vector<8x256xf32>
    %cst_15 = arith.constant dense<0.000000e+00> : vector<8xf32>
    %14 = vector.multi_reduction <add>, %13, %cst_15 [1] : vector<8x256xf32> to vector<8xf32>
    %15 = vector.shape_cast %14 : vector<8xf32> to vector<8x1xf32>
    %16 = arith.addf %8, %15 : vector<8x1xf32>
    %c2 = arith.constant 2 : index
    %c0_16 = arith.constant 0 : index
    %c0_17 = arith.constant 0 : index
    %17 = vector.load %arg3[%c2, %c0_16, %c0_17] : memref<4x8x16xbf16, #tpu.memory_space<vmem>>, vector<1x8x16xbf16>
    %18 = vector.shape_cast %17 : vector<1x8x16xbf16> to vector<8x16xbf16>
    %c0_18 = arith.constant 0 : index
    %c2_19 = arith.constant 2 : index
    %c0_20 = arith.constant 0 : index
    %c0_21 = arith.constant 0 : index
    %19 = vector.load %arg2[%c0_18, %c2_19, %c0_20, %c0_21] : memref<1x4x16x256xbf16, #tpu.memory_space<vmem>>, vector<1x1x16x256xbf16>
    %20 = vector.shape_cast %19 : vector<1x1x16x256xbf16> to vector<16x256xbf16>
    %cst_22 = arith.constant dense<0.000000e+00> : vector<8x256xf32>
    %21 = tpu.matmul %18, %20, %cst_22 {dimension_numbers = #tpu.dot_dimension_numbers<[1], [0], [0], [1], [0, 0, 1, 1], [], []>} : vector<8x16xbf16>, vector<16x256xbf16>, vector<8x256xf32> -> vector<8x256xf32>
    %cst_23 = arith.constant dense<0.000000e+00> : vector<8xf32>
    %22 = vector.multi_reduction <add>, %21, %cst_23 [1] : vector<8x256xf32> to vector<8xf32>
    %23 = vector.shape_cast %22 : vector<8xf32> to vector<8x1xf32>
    %24 = arith.addf %16, %23 : vector<8x1xf32>
    %c3 = arith.constant 3 : index
    %c0_24 = arith.constant 0 : index
    %c0_25 = arith.constant 0 : index
    %25 = vector.load %arg3[%c3, %c0_24, %c0_25] : memref<4x8x16xbf16, #tpu.memory_space<vmem>>, vector<1x8x16xbf16>
    %26 = vector.shape_cast %25 : vector<1x8x16xbf16> to vector<8x16xbf16>
    %c0_26 = arith.constant 0 : index
    %c3_27 = arith.constant 3 : index
    %c0_28 = arith.constant 0 : index
    %c0_29 = arith.constant 0 : index
    %27 = vector.load %arg2[%c0_26, %c3_27, %c0_28, %c0_29] : memref<1x4x16x256xbf16, #tpu.memory_space<vmem>>, vector<1x1x16x256xbf16>
    %28 = vector.shape_cast %27 : vector<1x1x16x256xbf16> to vector<16x256xbf16>
    %cst_30 = arith.constant dense<0.000000e+00> : vector<8x256xf32>
    %29 = tpu.matmul %26, %28, %cst_30 {dimension_numbers = #tpu.dot_dimension_numbers<[1], [0], [0], [1], [0, 0, 1, 1], [], []>} : vector<8x16xbf16>, vector<16x256xbf16>, vector<8x256xf32> -> vector<8x256xf32>
    %cst_31 = arith.constant dense<0.000000e+00> : vector<8xf32>
    %30 = vector.multi_reduction <add>, %29, %cst_31 [1] : vector<8x256xf32> to vector<8xf32>
    %31 = vector.shape_cast %30 : vector<8xf32> to vector<8x1xf32>
    %32 = arith.addf %24, %31 : vector<8x1xf32>
    %cst_32 = arith.constant 9.765625E-4 : f32
    %33 = vector.broadcast %cst_32 : f32 to vector<8x1xf32>
    %34 = arith.mulf %32, %33 : vector<8x1xf32>
    %cst_33 = arith.constant 0.000000e+00 : f32
    %35 = vector.broadcast %cst_33 : f32 to vector<8x1xf32>
    %36 = vector.broadcast %34 : vector<8x1xf32> to vector<8x256xf32>
    %37 = arith.subf %5, %36 : vector<8x256xf32>
    %38 = arith.mulf %37, %37 : vector<8x256xf32>
    %cst_34 = arith.constant dense<0.000000e+00> : vector<8xf32>
    %39 = vector.multi_reduction <add>, %38, %cst_34 [1] : vector<8x256xf32> to vector<8xf32>
    %40 = vector.shape_cast %39 : vector<8xf32> to vector<8x1xf32>
    %41 = arith.addf %35, %40 : vector<8x1xf32>
    %42 = vector.broadcast %34 : vector<8x1xf32> to vector<8x256xf32>
    %43 = arith.subf %13, %42 : vector<8x256xf32>
    %44 = arith.mulf %43, %43 : vector<8x256xf32>
    %cst_35 = arith.constant dense<0.000000e+00> : vector<8xf32>
    %45 = vector.multi_reduction <add>, %44, %cst_35 [1] : vector<8x256xf32> to vector<8xf32>
    %46 = vector.shape_cast %45 : vector<8xf32> to vector<8x1xf32>
    %47 = arith.addf %41, %46 : vector<8x1xf32>
    %48 = vector.broadcast %34 : vector<8x1xf32> to vector<8x256xf32>
    %49 = arith.subf %21, %48 : vector<8x256xf32>
    %50 = arith.mulf %49, %49 : vector<8x256xf32>
    %cst_36 = arith.constant dense<0.000000e+00> : vector<8xf32>
    %51 = vector.multi_reduction <add>, %50, %cst_36 [1] : vector<8x256xf32> to vector<8xf32>
    %52 = vector.shape_cast %51 : vector<8xf32> to vector<8x1xf32>
    %53 = arith.addf %47, %52 : vector<8x1xf32>
    %54 = vector.broadcast %34 : vector<8x1xf32> to vector<8x256xf32>
    %55 = arith.subf %29, %54 : vector<8x256xf32>
    %56 = arith.mulf %55, %55 : vector<8x256xf32>
    %cst_37 = arith.constant dense<0.000000e+00> : vector<8xf32>
    %57 = vector.multi_reduction <add>, %56, %cst_37 [1] : vector<8x256xf32> to vector<8xf32>
    %58 = vector.shape_cast %57 : vector<8xf32> to vector<8x1xf32>
    %59 = arith.addf %53, %58 : vector<8x1xf32>
    %cst_38 = arith.constant 9.765625E-4 : f32
    %60 = vector.broadcast %cst_38 : f32 to vector<8x1xf32>
    %61 = arith.mulf %59, %60 : vector<8x1xf32>
    %cst_39 = arith.constant 9.99999974E-6 : f32
    %62 = vector.broadcast %cst_39 : f32 to vector<8x1xf32>
    %63 = arith.addf %61, %62 : vector<8x1xf32>
    %64 = math.rsqrt %63 : vector<8x1xf32>
    %65 = vector.broadcast %34 : vector<8x1xf32> to vector<8x256xf32>
    %66 = arith.subf %5, %65 : vector<8x256xf32>
    %67 = vector.broadcast %64 : vector<8x1xf32> to vector<8x256xf32>
    %68 = arith.mulf %66, %67 : vector<8x256xf32>
    %cst_40 = arith.constant 0.000000e+00 : f32
    %69 = vector.broadcast %cst_40 : f32 to vector<8x256xf32>
    %70 = arith.maximumf %68, %69 : vector<8x256xf32>
    %c0_41 = arith.constant 0 : index
    %c0_42 = arith.constant 0 : index
    %c0_43 = arith.constant 0 : index
    %c0_44 = arith.constant 0 : index
    %71 = vector.load %arg4[%c0_41, %c0_42, %c0_43, %c0_44] : memref<1x4x8x256xf32, #tpu.memory_space<vmem>>, vector<1x1x8x256xf32>
    %72 = vector.shape_cast %71 : vector<1x1x8x256xf32> to vector<8x256xf32>
    %73 = vector.shape_cast %70 : vector<8x256xf32> to vector<1x1x8x256xf32>
    tpu.vector_store %arg4[%c0_41, %c0_42, %c0_43, %c0_44], %73 {strides = array<i32>} : memref<1x4x8x256xf32, #tpu.memory_space<vmem>>, vector<1x1x8x256xf32>,
    %74 = vector.broadcast %34 : vector<8x1xf32> to vector<8x256xf32>
    %75 = arith.subf %13, %74 : vector<8x256xf32>
    %76 = vector.broadcast %64 : vector<8x1xf32> to vector<8x256xf32>
    %77 = arith.mulf %75, %76 : vector<8x256xf32>
    %cst_45 = arith.constant 0.000000e+00 : f32
    %78 = vector.broadcast %cst_45 : f32 to vector<8x256xf32>
    %79 = arith.maximumf %77, %78 : vector<8x256xf32>
    %c0_46 = arith.constant 0 : index
    %c1_47 = arith.constant 1 : index
    %c0_48 = arith.constant 0 : index
    %c0_49 = arith.constant 0 : index
    %80 = vector.load %arg4[%c0_46, %c1_47, %c0_48, %c0_49] : memref<1x4x8x256xf32, #tpu.memory_space<vmem>>, vector<1x1x8x256xf32>
    %81 = vector.shape_cast %80 : vector<1x1x8x256xf32> to vector<8x256xf32>
    %82 = vector.shape_cast %79 : vector<8x256xf32> to vector<1x1x8x256xf32>
    tpu.vector_store %arg4[%c0_46, %c1_47, %c0_48, %c0_49], %82 {strides = array<i32>} : memref<1x4x8x256xf32, #tpu.memory_space<vmem>>, vector<1x1x8x256xf32>,
    %83 = vector.broadcast %34 : vector<8x1xf32> to vector<8x256xf32>
    %84 = arith.subf %21, %83 : vector<8x256xf32>
    %85 = vector.broadcast %64 : vector<8x1xf32> to vector<8x256xf32>
    %86 = arith.mulf %84, %85 : vector<8x256xf32>
    %cst_50 = arith.constant 0.000000e+00 : f32
    %87 = vector.broadcast %cst_50 : f32 to vector<8x256xf32>
    %88 = arith.maximumf %86, %87 : vector<8x256xf32>
    %c0_51 = arith.constant 0 : index
    %c2_52 = arith.constant 2 : index
    %c0_53 = arith.constant 0 : index
    %c0_54 = arith.constant 0 : index
    %89 = vector.load %arg4[%c0_51, %c2_52, %c0_53, %c0_54] : memref<1x4x8x256xf32, #tpu.memory_space<vmem>>, vector<1x1x8x256xf32>
    %90 = vector.shape_cast %89 : vector<1x1x8x256xf32> to vector<8x256xf32>
    %91 = vector.shape_cast %88 : vector<8x256xf32> to vector<1x1x8x256xf32>
    tpu.vector_store %arg4[%c0_51, %c2_52, %c0_53, %c0_54], %91 {strides = array<i32>} : memref<1x4x8x256xf32, #tpu.memory_space<vmem>>, vector<1x1x8x256xf32>,
    %92 = vector.broadcast %34 : vector<8x1xf32> to vector<8x256xf32>
    %93 = arith.subf %29, %92 : vector<8x256xf32>
    %94 = vector.broadcast %64 : vector<8x1xf32> to vector<8x256xf32>
    %95 = arith.mulf %93, %94 : vector<8x256xf32>
    %cst_55 = arith.constant 0.000000e+00 : f32
    %96 = vector.broadcast %cst_55 : f32 to vector<8x256xf32>
    %97 = arith.maximumf %95, %96 : vector<8x256xf32>
    %c0_56 = arith.constant 0 : index
    %c3_57 = arith.constant 3 : index
    %c0_58 = arith.constant 0 : index
    %c0_59 = arith.constant 0 : index
    %98 = vector.load %arg4[%c0_56, %c3_57, %c0_58, %c0_59] : memref<1x4x8x256xf32, #tpu.memory_space<vmem>>, vector<1x1x8x256xf32>
    %99 = vector.shape_cast %98 : vector<1x1x8x256xf32> to vector<8x256xf32>
    %100 = vector.shape_cast %97 : vector<8x256xf32> to vector<1x1x8x256xf32>
    tpu.vector_store %arg4[%c0_56, %c3_57, %c0_58, %c0_59], %100 {strides = array<i32>} : memref<1x4x8x256xf32, #tpu.memory_space<vmem>>, vector<1x1x8x256xf32>,
    return
  }
  func.func @transform_0(%arg0: i32, %arg1: i32) -> (i32, i32, i32, i32) {
    %c0_i32 = arith.constant 0 : i32
    %c0_i32_0 = arith.constant 0 : i32
    %c0_i32_1 = arith.constant 0 : i32
    %c0_i32_2 = arith.constant 0 : i32
    return %arg0, %c0_i32, %c0_i32_0, %c0_i32_1 : i32, i32, i32, i32
  }
  func.func @transform_1(%arg0: i32, %arg1: i32) -> (i32, i32, i32) {
    %c0_i32 = arith.constant 0 : i32
    %c0_i32_0 = arith.constant 0 : i32
    %c0_i32_1 = arith.constant 0 : i32
    return %c0_i32, %arg1, %c0_i32_0 : i32, i32, i32
  }
  func.func @transform_2(%arg0: i32, %arg1: i32) -> (i32, i32, i32, i32) {
    %c0_i32 = arith.constant 0 : i32
    %c0_i32_0 = arith.constant 0 : i32
    %c0_i32_1 = arith.constant 0 : i32
    return %arg0, %c0_i32, %arg1, %c0_i32_0 : i32, i32, i32, i32
  }
}

</mosaic_0001>

<llo_original>
// kernel: upconv_layer.1
$region0: #{upconv_layer.1}
  #allocation0 [shape = 'u32[]', space=smem, size = 0x4, offset = 0x4, fixed_abs, tag = 'smem constant byte address 0x4 - core index']
  #allocation1 [shape = 'u32[144,128]{1,0:T(1,128)}', space=vmem, size = 0x12000, scoped, tag = 'internal scratch']
  %s0 = inlined_call_operand.vmem [shape: bf16[2,4,16,256], index: 0, kind: input, shape index: {}]
  %s1 = inlined_call_operand.vmem [shape: bf16[4,8,16], index: 1, kind: input, shape index: {}]
  %s2 = inlined_call_operand.vmem [shape: f32[2,4,8,256], index: 2, kind: output, shape index: {}]
  %s3 = sld [smem:[#allocation0]]
  $region41: #{upconv_layer.1} parent=0
    _
  %s5 = ssub.s32 1, %s3
  %s6 = scalar_select 0, %s5, %s3
  loop: start=0, step=1, limit=4
  $region2: #{upconv_layer.1} parent=0 // loop_pre_header
    _
  $region3: #{upconv_layer.1} parent=0 // loop_header
    %s8 = sphi 0, %s12
    %p9 = scmp.ge.s32.totalorder %s8, 4
    %s15 = sphi 0, %s27
    %s16 = sphi 0, %s23
    %s17 = sphi 0, %s15
    %s18 = sphi 0, %s16
    %s19 = sphi 0, %s17
    %s20 = sphi 0, %s18
    %s30 = sphi 0, %s32
    %s33 = sphi 0, %s30
    %s34 = sphi 0, %s33
    %s50 = sphi 0, %s34
    %s56 = sphi 0, %s58
    %s59 = sphi 0, %s56
    %s60 = sphi 0, %s59
    %s76 = sphi 0, %s60
    %s84 = sphi 0, %s86
    %s87 = sphi 0, %s84
    %s88 = sphi 0, %s87
    %s104 = sphi 0, %s88
  $region4: #{upconv_layer.1} parent=0 // loop_header_branch
    %11 = sbr.rel (%p9) target = $region8
  $region5: #{upconv_layer.1} parent=0 // loop_body
    %s13 = ssub.s32 %s8, 1
    %s14 = ssub.s32 %s8, 2
    %s21 = sadd.s32 1, %s16
    %p22 = scmp.ge.s32.totalorder %s21, 1
    %s23 = scalar_select %p22, 0, %s21
    %s24 = sadd.s32 1, %s15
    %s25 = scalar_select %p22, %s24, %s15
    %p26 = scmp.ge.s32.totalorder %s25, 2
    %s27 = scalar_select %p26, 0, %s25
    %s28 = ssub.s32 %s15, %s27
    %p29 = scmp.eq.s32.totalorder %s28, 0
    %s31 = sadd.s32 %s30, 1
    %s32 = scalar_select %p29, %s30, %s31
    %p35 = pneg %p29
    %p36 = scmp.eq.s32.totalorder %s8, 1
    %p37 = por %p35, %p36
    %p38 = scmp.ne.s32.totalorder %s30, %s33
    %p39 = scmp.eq.s32.totalorder %s8, 0
    %p40 = por %p38, %p39
    %p41 = scmp.ne.s32.totalorder %s30, %s33
    %p42 = scmp.eq.s32.totalorder %s13, 1
    %p43 = por %p41, %p42
    %p44 = scmp.ne.s32.totalorder %s33, %s34
    %p45 = scmp.eq.s32.totalorder %s13, 0
    %p46 = por %p44, %p45
    %p47 = scmp.ne.s32.totalorder %s33, %s34
    %p48 = scmp.eq.s32.totalorder %s14, 1
    %p49 = por %p47, %p48
    %p51 = scmp.ne.s32.totalorder %s34, %s50
    %p52 = scmp.eq.s32.totalorder %s14, 0
    %p53 = por %p51, %p52
    %s54 = ssub.s32 %s16, %s23
    %p55 = scmp.eq.s32.totalorder %s54, 0
    %s57 = sadd.s32 %s56, 1
    %s58 = scalar_select %p55, %s56, %s57
    %p61 = pneg %p55
    %p62 = scmp.eq.s32.totalorder %s8, 1
    %p63 = por %p61, %p62
    %p64 = scmp.ne.s32.totalorder %s56, %s59
    %p65 = scmp.eq.s32.totalorder %s8, 0
    %p66 = por %p64, %p65
    %p67 = scmp.ne.s32.totalorder %s56, %s59
    %p68 = scmp.eq.s32.totalorder %s13, 1
    %p69 = por %p67, %p68
    %p70 = scmp.ne.s32.totalorder %s59, %s60
    %p71 = scmp.eq.s32.totalorder %s13, 0
    %p72 = por %p70, %p71
    %p73 = scmp.ne.s32.totalorder %s59, %s60
    %p74 = scmp.eq.s32.totalorder %s14, 1
    %p75 = por %p73, %p74
    %p77 = scmp.ne.s32.totalorder %s60, %s76
    %p78 = scmp.eq.s32.totalorder %s14, 0
    %p79 = por %p77, %p78
    %s80 = ssub.s32 %s15, %s27
    %s81 = ssub.s32 %s16, %s23
    %s82 = sor.u32 %s80, %s81
    %p83 = scmp.eq.s32.totalorder %s82, 0
    %s85 = sadd.s32 %s84, 1
    %s86 = scalar_select %p83, %s84, %s85
    %p89 = pneg %p83
    %p90 = scmp.eq.s32.totalorder %s8, 1
    %p91 = por %p89, %p90
    %p92 = scmp.ne.s32.totalorder %s84, %s87
    %p93 = scmp.eq.s32.totalorder %s8, 0
    %p94 = por %p92, %p93
    %p95 = scmp.ne.s32.totalorder %s84, %s87
    %p96 = scmp.eq.s32.totalorder %s13, 1
    %p97 = por %p95, %p96
    %p98 = scmp.ne.s32.totalorder %s87, %s88
    %p99 = scmp.eq.s32.totalorder %s13, 0
    %p100 = por %p98, %p99
    %p101 = scmp.ne.s32.totalorder %s87, %s88
    %p102 = scmp.eq.s32.totalorder %s14, 1
    %p103 = por %p101, %p102
    %p105 = scmp.ne.s32.totalorder %s88, %s104
    %p106 = scmp.eq.s32.totalorder %s14, 0
    %p107 = por %p105, %p106
    %p108 = scmp.le.s32.totalorder 1, %s8
    %p109 = scmp.lt.s32.totalorder %s8, 3
    %p110 = pnand %p108, %p109
    %p111 = pneg %p110
    // Predicated region
    $region9: #{upconv_layer.1} parent=5 // pred_check
      _
    $region10: #{upconv_layer.1} parent=5 // pred_check_branch
      %113 = sbr.rel (%p110) target = $region12
    $region11: #{upconv_layer.1} parent=5 // pred_region
      %s114 = ssub.s32 %s8, 1
      // Predicated region
      $region13: #{upconv_layer.1} parent=11 // pred_check
        %p115 = pneg %p72
      $region14: #{upconv_layer.1} parent=11 // pred_check_branch
        %117 = sbr.rel (%p115) target = $region16
      $region15: #{upconv_layer.1} parent=11 // pred_region
        %p118 = scmp.lt.s32.totalorder %s18, 0
        %s119 = scalar_select %p118, %s18, 0
        %s120 = smul.addr %s119, 4
        %s121 = scalar_lea.vmem %s1, %s120
      $region16: #{upconv_layer.1} parent=11 // pred_fallthru
        _
    $region12: #{upconv_layer.1} parent=5 // pred_fallthru
      _
    %p122 = scmp.lt.s32.totalorder %s8, 2
    // Predicated region
    $region17: #{upconv_layer.1} parent=5 // pred_check
      %p123 = pneg %p122
    $region18: #{upconv_layer.1} parent=5 // pred_check_branch
      %125 = sbr.rel (%p123) target = $region20
    $region19: #{upconv_layer.1} parent=5 // pred_region
      // Predicated region
      $region21: #{upconv_layer.1} parent=19 // pred_check
        %p126 = pneg %p40
      $region22: #{upconv_layer.1} parent=19 // pred_check_branch
        %128 = sbr.rel (%p126) target = $region24
      $region23: #{upconv_layer.1} parent=19 // pred_region
        %p129 = scmp.lt.s32.totalorder %s15, 1
        %s130 = scalar_select %p129, %s15, 1
        %s131 = smul.addr %s130, 16
        %s132 = smul.addr %s131, 4
        %s133 = scalar_lea.vmem %s0, %s132
      $region24: #{upconv_layer.1} parent=19 // pred_fallthru
        _
    $region20: #{upconv_layer.1} parent=5 // pred_fallthru
      _
    %p134 = scmp.le.s32.totalorder 1, %s8
    %p135 = scmp.lt.s32.totalorder %s8, 3
    %p136 = pnand %p134, %p135
    %p137 = pneg %p136
    // Predicated region
    $region25: #{upconv_layer.1} parent=5 // pred_check
      _
    $region26: #{upconv_layer.1} parent=5 // pred_check_branch
      %139 = sbr.rel (%p136) target = $region28
    $region27: #{upconv_layer.1} parent=5 // pred_region
      %s140 = ssub.s32 %s8, 1
      %p141 = scmp.lt.s32.totalorder %s17, 1
      %s142 = scalar_select %p141, %s17, 1
      %s143 = smul.addr %s142, 16
      %s144 = smul.addr %s143, 4
      %s145 = scalar_lea.vmem %s0, %s144
      %p146 = pneg %p46
      %p147 = pneg %p43
      %p148 = scmp.lt.s32.totalorder %s18, 0
      %s149 = scalar_select %p148, %s18, 0
      %s150 = smul.addr %s149, 4
      %s151 = scalar_lea.vmem %s1, %s150
      %p152 = pneg %p72
      %p153 = pneg %p69
      %p154 = pneg %p100
      %p155 = pneg %p97
      %p156 = scmp.lt.s32.totalorder %s17, 1
      %s157 = scalar_select %p156, %s17, 1
      %p158 = scmp.lt.s32.totalorder %s18, 0
      %s159 = scalar_select %p158, %s18, 0
      %s160 = smul.addr %s159, 2
      %s161 = smul.addr %s157, 8
      %s162 = sadd.s32 %s160, %s161
      %s163 = smul.addr %s162, 8
      %s164 = scalar_lea.vmem %s2, %s163
      %p165 = scmp.lt.s32.totalorder %s17, 1
      %s166 = scalar_select %p165, %s17, 1
      %s167 = smul.addr %s166, 16
      %s168 = smul.addr %s167, 4
      %s169 = scalar_lea.vmem %s0, %s168
      %p170 = scmp.lt.s32.totalorder %s18, 0
      %s171 = scalar_select %p170, %s18, 0
      %s172 = smul.addr %s171, 4
      %s173 = scalar_lea.vmem %s1, %s172
      %p174 = scmp.lt.s32.totalorder %s17, 1
      %s175 = scalar_select %p174, %s17, 1
      %p176 = scmp.lt.s32.totalorder %s18, 0
      %s177 = scalar_select %p176, %s18, 0
      %s178 = smul.addr %s177, 2
      %s179 = smul.addr %s175, 8
      %s180 = sadd.s32 %s178, %s179
      %s181 = smul.addr %s180, 8
      %s182 = scalar_lea.vmem %s2, %s181
      %v184 = vld [vmem:[%s173] sm:$0xf]
      %v185 = vld [vmem:[%s169] sm:$0xff]
      %v186 = vld [vmem:[%s169 + $0x8] sm:$0xff]
      %v189 = vunpack.c.l.b16 %v185
      %v190 = vunpack.c.h.b16 %v185
      %v191 = vunpack.c.l.b16 %v186
      %v192 = vunpack.c.h.b16 %v186
      %v193 = vpack.c.b16 %v191, %v189
      %v194 = vpack.c.b16 %v192, %v190
      %vm197 = vcmask 130048
      %v199 = vsel %vm197, %v184, 0
      %201 = vmatprep.subr.bf16.mxu0 0
      %202 = vmatpush1.bf16.msra.mxu0 0
      %203 = vmatprep.subr.bf16.mxu0 0
      %204 = vmatpush1.bf16.msra.mxu0 0
      %205 = vmatprep.subr.bf16.mxu0 0
      %206 = vmatpush1.bf16.msra.mxu0 0
      %207 = vmatprep.subr.bf16.mxu0 0
      %208 = vmatpush1.bf16.msra.mxu0 0
      %209 = vmatprep.subr.bf16.mxu0 0
      %210 = vmatpush1.bf16.msra.mxu0 0
      %211 = vmatprep.subr.bf16.mxu0 0
      %212 = vmatpush1.bf16.msra.mxu0 0
      %213 = vmatprep.subr.bf16.mxu0 0
      %214 = vmatpush1.bf16.msra.mxu0 0
      %215 = vmatprep.subr.bf16.mxu0 %v194
      %216 = vmatpush1.bf16.msra.mxu0 %v193
      %217 = vmatprep.subr.bf16.mxu0 0
      %218 = vmatpush2.bf16.msra.mxu0 0
      %219 = vmatprep.subr.bf16.mxu0 0
      %220 = vmatpush2.bf16.msra.mxu0 0
      %221 = vmatprep.subr.bf16.mxu0 0
      %222 = vmatpush2.bf16.msra.mxu0 0
      %223 = vmatprep.subr.bf16.mxu0 0
      %224 = vmatpush2.bf16.msra.mxu0 0
      %225 = vmatprep.subr.bf16.mxu0 0
      %226 = vmatpush2.bf16.msra.mxu0 0
      %227 = vmatprep.subr.bf16.mxu0 0
      %228 = vmatpush2.bf16.msra.mxu0 0
      %229 = vmatprep.subr.bf16.mxu0 0
      %230 = vmatpush2.bf16.msra.mxu0 0
      %231 = vmatprep.subr.bf16.mxu0 0
      %232 = vmatpush2.bf16.msra.mxu0 0
      %233 = vmatprep.mubr.bf16.mxu0 0
      %234 = vmatmul.mubr.bf16.gmra.mxu0 %v199
      %v235 = vpop.f32.mrf.mxu0
      %v236 = vadd.f32 0.0, %v235
      %v237 = vpop.f32.mrf.mxu0
      %v238 = vadd.f32 0.0, %v237
      %v239 = vpop.f32.mrf.mxu0
      %v240 = vpop.f32.mrf.mxu0
      %241 = vdwg.mxu0
      %v242 = vadd.f32 %v236, %v238
      %243 = vadd.xlane.f32.xlu0 %v242
      %v244 = vpop.xlane.xlu0 %243
      %v245 = vadd.f32 %v244, 0.0
      %s246 = scalar_lea.vmem %s173, 4
      %v247 = vld [vmem:[%s246] sm:$0xf]
      %s248 = scalar_lea.vmem %s169, 16
      %v249 = vld [vmem:[%s248] sm:$0xff]
      %v250 = vld [vmem:[%s248 + $0x8] sm:$0xff]
      %v253 = vunpack.c.l.b16 %v249
      %v254 = vunpack.c.h.b16 %v249
      %v255 = vunpack.c.l.b16 %v250
      %v256 = vunpack.c.h.b16 %v250
      %v257 = vpack.c.b16 %v255, %v253
      %v258 = vpack.c.b16 %v256, %v254
      %v262 = vsel %vm197, %v247, 0
      %264 = vmatprep.subr.bf16.mxu0 0
      %265 = vmatpush1.bf16.msra.mxu0 0
      %266 = vmatprep.subr.bf16.mxu0 0
      %267 = vmatpush1.bf16.msra.mxu0 0
      %268 = vmatprep.subr.bf16.mxu0 0
      %269 = vmatpush1.bf16.msra.mxu0 0
      %270 = vmatprep.subr.bf16.mxu0 0
      %271 = vmatpush1.bf16.msra.mxu0 0
      %272 = vmatprep.subr.bf16.mxu0 0
      %273 = vmatpush1.bf16.msra.mxu0 0
      %274 = vmatprep.subr.bf16.mxu0 0
      %275 = vmatpush1.bf16.msra.mxu0 0
      %276 = vmatprep.subr.bf16.mxu0 0
      %277 = vmatpush1.bf16.msra.mxu0 0
      %278 = vmatprep.subr.bf16.mxu0 %v258
      %279 = vmatpush1.bf16.msra.mxu0 %v257
      %280 = vmatprep.subr.bf16.mxu0 0
      %281 = vmatpush2.bf16.msra.mxu0 0
      %282 = vmatprep.subr.bf16.mxu0 0
      %283 = vmatpush2.bf16.msra.mxu0 0
      %284 = vmatprep.subr.bf16.mxu0 0
      %285 = vmatpush2.bf16.msra.mxu0 0
      %286 = vmatprep.subr.bf16.mxu0 0
      %287 = vmatpush2.bf16.msra.mxu0 0
      %288 = vmatprep.subr.bf16.mxu0 0
      %289 = vmatpush2.bf16.msra.mxu0 0
      %290 = vmatprep.subr.bf16.mxu0 0
      %291 = vmatpush2.bf16.msra.mxu0 0
      %292 = vmatprep.subr.bf16.mxu0 0
      %293 = vmatpush2.bf16.msra.mxu0 0
      %294 = vmatprep.subr.bf16.mxu0 0
      %295 = vmatpush2.bf16.msra.mxu0 0
      %296 = vmatprep.mubr.bf16.mxu0 0
      %297 = vmatmul.mubr.bf16.gmra.mxu0 %v262
      %v298 = vpop.f32.mrf.mxu0
      %v299 = vadd.f32 0.0, %v298
      %v300 = vpop.f32.mrf.mxu0
      %v301 = vadd.f32 0.0, %v300
      %v302 = vpop.f32.mrf.mxu0
      %v303 = vpop.f32.mrf.mxu0
      %304 = vdwg.mxu0
      %v305 = vadd.f32 %v299, %v301
      %306 = vadd.xlane.f32.xlu0 %v305
      %v307 = vpop.xlane.xlu0 %306
      %v308 = vadd.f32 %v245, %v307
      %s309 = scalar_lea.vmem %s173, 8
      %v310 = vld [vmem:[%s309] sm:$0xf]
      %s311 = scalar_lea.vmem %s169, 32
      %v312 = vld [vmem:[%s311] sm:$0xff]
      %v313 = vld [vmem:[%s311 + $0x8] sm:$0xff]
      %v316 = vunpack.c.l.b16 %v312
      %v317 = vunpack.c.h.b16 %v312
      %v318 = vunpack.c.l.b16 %v313
      %v319 = vunpack.c.h.b16 %v313
      %v320 = vpack.c.b16 %v318, %v316
      %v321 = vpack.c.b16 %v319, %v317
      %v325 = vsel %vm197, %v310, 0
      %327 = vmatprep.subr.bf16.mxu0 0
      %328 = vmatpush1.bf16.msra.mxu0 0
      %329 = vmatprep.subr.bf16.mxu0 0
      %330 = vmatpush1.bf16.msra.mxu0 0
      %331 = vmatprep.subr.bf16.mxu0 0
      %332 = vmatpush1.bf16.msra.mxu0 0
      %333 = vmatprep.subr.bf16.mxu0 0
      %334 = vmatpush1.bf16.msra.mxu0 0
      %335 = vmatprep.subr.bf16.mxu0 0
      %336 = vmatpush1.bf16.msra.mxu0 0
      %337 = vmatprep.subr.bf16.mxu0 0
      %338 = vmatpush1.bf16.msra.mxu0 0
      %339 = vmatprep.subr.bf16.mxu0 0
      %340 = vmatpush1.bf16.msra.mxu0 0
      %341 = vmatprep.subr.bf16.mxu0 %v321
      %342 = vmatpush1.bf16.msra.mxu0 %v320
      %343 = vmatprep.subr.bf16.mxu0 0
      %344 = vmatpush2.bf16.msra.mxu0 0
      %345 = vmatprep.subr.bf16.mxu0 0
      %346 = vmatpush2.bf16.msra.mxu0 0
      %347 = vmatprep.subr.bf16.mxu0 0
      %348 = vmatpush2.bf16.msra.mxu0 0
      %349 = vmatprep.subr.bf16.mxu0 0
      %350 = vmatpush2.bf16.msra.mxu0 0
      %351 = vmatprep.subr.bf16.mxu0 0
      %352 = vmatpush2.bf16.msra.mxu0 0
      %353 = vmatprep.subr.bf16.mxu0 0
      %354 = vmatpush2.bf16.msra.mxu0 0
      %355 = vmatprep.subr.bf16.mxu0 0
      %356 = vmatpush2.bf16.msra.mxu0 0
      %357 = vmatprep.subr.bf16.mxu0 0
      %358 = vmatpush2.bf16.msra.mxu0 0
      %359 = vmatprep.mubr.bf16.mxu0 0
      %360 = vmatmul.mubr.bf16.gmra.mxu0 %v325
      %v361 = vpop.f32.mrf.mxu0
      %v362 = vadd.f32 0.0, %v361
      %v363 = vpop.f32.mrf.mxu0
      %v364 = vadd.f32 0.0, %v363
      %v365 = vpop.f32.mrf.mxu0
      %v366 = vpop.f32.mrf.mxu0
      %367 = vdwg.mxu0
      %v368 = vadd.f32 %v362, %v364
      %369 = vadd.xlane.f32.xlu0 %v368
      %v370 = vpop.xlane.xlu0 %369
      %v371 = vadd.f32 %v308, %v370
      %s372 = scalar_lea.vmem %s173, 12
      %v373 = vld [vmem:[%s372] sm:$0xf]
      %s374 = scalar_lea.vmem %s169, 48
      %v375 = vld [vmem:[%s374] sm:$0xff]
      %v376 = vld [vmem:[%s374 + $0x8] sm:$0xff]
      %v379 = vunpack.c.l.b16 %v375
      %v380 = vunpack.c.h.b16 %v375
      %v381 = vunpack.c.l.b16 %v376
      %v382 = vunpack.c.h.b16 %v376
      %v383 = vpack.c.b16 %v381, %v379
      %v384 = vpack.c.b16 %v382, %v380
      %v388 = vsel %vm197, %v373, 0
      %390 = vmatprep.subr.bf16.mxu0 0
      %391 = vmatpush1.bf16.msra.mxu0 0
      %392 = vmatprep.subr.bf16.mxu0 0
      %393 = vmatpush1.bf16.msra.mxu0 0
      %394 = vmatprep.subr.bf16.mxu0 0
      %395 = vmatpush1.bf16.msra.mxu0 0
      %396 = vmatprep.subr.bf16.mxu0 0
      %397 = vmatpush1.bf16.msra.mxu0 0
      %398 = vmatprep.subr.bf16.mxu0 0
      %399 = vmatpush1.bf16.msra.mxu0 0
      %400 = vmatprep.subr.bf16.mxu0 0
      %401 = vmatpush1.bf16.msra.mxu0 0
      %402 = vmatprep.subr.bf16.mxu0 0
      %403 = vmatpush1.bf16.msra.mxu0 0
      %404 = vmatprep.subr.bf16.mxu0 %v384
      %405 = vmatpush1.bf16.msra.mxu0 %v383
      %406 = vmatprep.subr.bf16.mxu0 0
      %407 = vmatpush2.bf16.msra.mxu0 0
      %408 = vmatprep.subr.bf16.mxu0 0
      %409 = vmatpush2.bf16.msra.mxu0 0
      %410 = vmatprep.subr.bf16.mxu0 0
      %411 = vmatpush2.bf16.msra.mxu0 0
      %412 = vmatprep.subr.bf16.mxu0 0
      %413 = vmatpush2.bf16.msra.mxu0 0
      %414 = vmatprep.subr.bf16.mxu0 0
      %415 = vmatpush2.bf16.msra.mxu0 0
      %416 = vmatprep.subr.bf16.mxu0 0
      %417 = vmatpush2.bf16.msra.mxu0 0
      %418 = vmatprep.subr.bf16.mxu0 0
      %419 = vmatpush2.bf16.msra.mxu0 0
      %420 = vmatprep.subr.bf16.mxu0 0
      %421 = vmatpush2.bf16.msra.mxu0 0
      %422 = vmatprep.mubr.bf16.mxu0 0
      %423 = vmatmul.mubr.bf16.gmra.mxu0 %v388
      %v424 = vpop.f32.mrf.mxu0
      %v425 = vadd.f32 0.0, %v424
      %v426 = vpop.f32.mrf.mxu0
      %v427 = vadd.f32 0.0, %v426
      %v428 = vpop.f32.mrf.mxu0
      %v429 = vpop.f32.mrf.mxu0
      %430 = vdwg.mxu0
      %v431 = vadd.f32 %v425, %v427
      %432 = vadd.xlane.f32.xlu0 %v431
      %v433 = vpop.xlane.xlu0 %432
      %v434 = vadd.f32 %v371, %v433
      %v435 = vmul.f32 %v434, 0.0009765625
      %v436 = vsub.f32 %v236, %v435
      %v437 = vsub.f32 %v238, %v435
      %v438 = vmul.f32 %v436, %v436
      %v439 = vmul.f32 %v437, %v437
      %v440 = vadd.f32 %v438, %v439
      %441 = vadd.xlane.f32.xlu0 %v440
      %v442 = vpop.xlane.xlu0 %441
      %v443 = vadd.f32 %v442, 0.0
      %v444 = vsub.f32 %v299, %v435
      %v445 = vsub.f32 %v301, %v435
      %v446 = vmul.f32 %v444, %v444
      %v447 = vmul.f32 %v445, %v445
      %v448 = vadd.f32 %v446, %v447
      %449 = vadd.xlane.f32.xlu0 %v448
      %v450 = vpop.xlane.xlu0 %449
      %v451 = vadd.f32 %v443, %v450
      %v452 = vsub.f32 %v362, %v435
      %v453 = vsub.f32 %v364, %v435
      %v454 = vmul.f32 %v452, %v452
      %v455 = vmul.f32 %v453, %v453
      %v456 = vadd.f32 %v454, %v455
      %457 = vadd.xlane.f32.xlu0 %v456
      %v458 = vpop.xlane.xlu0 %457
      %v459 = vadd.f32 %v451, %v458
      %v460 = vsub.f32 %v425, %v435
      %v461 = vsub.f32 %v427, %v435
      %v462 = vmul.f32 %v460, %v460
      %v463 = vmul.f32 %v461, %v461
      %v464 = vadd.f32 %v462, %v463
      %465 = vadd.xlane.f32.xlu0 %v464
      %v466 = vpop.xlane.xlu0 %465
      %v467 = vadd.f32 %v459, %v466
      %v468 = vmul.f32 %v467, 0.0009765625
      %v469 = vadd.f32 %v468, 1e-05
      %v470 = vrsqrt.pop %v469
      %v471 = vmul.f32 %v436, %v470
      %v472 = vmul.f32 %v437, %v470
      %v473 = vmax.f32 %v471, 0.0
      %v474 = vmax.f32 %v472, 0.0
      %475 = vst [vmem:[%s182] sm:$0xff] %v473
      %476 = vst [vmem:[%s182 + $0x8] sm:$0xff] %v474
      %v477 = vmul.f32 %v444, %v470
      %v478 = vmul.f32 %v445, %v470
      %v479 = vmax.f32 %v477, 0.0
      %v480 = vmax.f32 %v478, 0.0
      %s481 = scalar_lea.vmem %s182, 16
      %482 = vst [vmem:[%s481] sm:$0xff] %v479
      %483 = vst [vmem:[%s481 + $0x8] sm:$0xff] %v480
      %v484 = vmul.f32 %v452, %v470
      %v485 = vmul.f32 %v453, %v470
      %v486 = vmax.f32 %v484, 0.0
      %v487 = vmax.f32 %v485, 0.0
      %s488 = scalar_lea.vmem %s182, 32
      %489 = vst [vmem:[%s488] sm:$0xff] %v486
      %490 = vst [vmem:[%s488 + $0x8] sm:$0xff] %v487
      %v491 = vmul.f32 %v460, %v470
      %v492 = vmul.f32 %v461, %v470
      %v493 = vmax.f32 %v491, 0.0
      %v494 = vmax.f32 %v492, 0.0
      %s495 = scalar_lea.vmem %s182, 48
      %496 = vst [vmem:[%s495] sm:$0xff] %v493
      %497 = vst [vmem:[%s495 + $0x8] sm:$0xff] %v494
      %p498 = scmp.lt.s32.totalorder %s17, 1
      %s499 = scalar_select %p498, %s17, 1
      %p500 = scmp.lt.s32.totalorder %s18, 0
      %s501 = scalar_select %p500, %s18, 0
      %s502 = smul.addr %s501, 2
      %s503 = smul.addr %s499, 8
      %s504 = sadd.s32 %s502, %s503
      %s505 = smul.addr %s504, 8
      %s506 = scalar_lea.vmem %s2, %s505
      // Predicated region
      $region29: #{upconv_layer.1} parent=27 // pred_check
        %p507 = pneg %p97
      $region30: #{upconv_layer.1} parent=27 // pred_check_branch
        %509 = sbr.rel (%p507) target = $region32
      $region31: #{upconv_layer.1} parent=27 // pred_region
        _
      $region32: #{upconv_layer.1} parent=27 // pred_fallthru
        _
    $region28: #{upconv_layer.1} parent=5 // pred_fallthru
      _
    %p510 = scmp.le.s32.totalorder 2, %s8
    // Predicated region
    $region33: #{upconv_layer.1} parent=5 // pred_check
      %p511 = pneg %p510
    $region34: #{upconv_layer.1} parent=5 // pred_check_branch
      %513 = sbr.rel (%p511) target = $region36
    $region35: #{upconv_layer.1} parent=5 // pred_region
      %s514 = ssub.s32 %s8, 2
      // Predicated region
      $region37: #{upconv_layer.1} parent=35 // pred_check
        %p515 = pneg %p103
      $region38: #{upconv_layer.1} parent=35 // pred_check_branch
        %517 = sbr.rel (%p515) target = $region40
      $region39: #{upconv_layer.1} parent=35 // pred_region
        %p518 = scmp.lt.s32.totalorder %s19, 1
        %s519 = scalar_select %p518, %s19, 1
        %p520 = scmp.lt.s32.totalorder %s20, 0
        %s521 = scalar_select %p520, %s20, 0
        %s522 = smul.addr %s521, 2
        %s523 = smul.addr %s519, 8
        %s524 = sadd.s32 %s522, %s523
        %s525 = smul.addr %s524, 8
        %s526 = scalar_lea.vmem %s2, %s525
      $region40: #{upconv_layer.1} parent=35 // pred_fallthru
        _
    $region36: #{upconv_layer.1} parent=5 // pred_fallthru
      _
  $region6: #{upconv_layer.1} parent=0 // loop_footer
    %s12 = sadd.s32 1, %s8
  $region7: #{upconv_layer.1} parent=0 // loop_footer_branch
    %7 = sbr.rel target = $region3
  $region8: #{upconv_layer.1} parent=0 // loop_exit
    _

</llo_original>
